<compile_context>
chip_gen: v7x
topology: tpu7x:2x2x1
jax: 0.10.0
libtpu: 0.0.40
codegen_flags: <defaults>
</compile_context>

<pallas_src>
import jax
import jax.numpy as jnp
from jax.experimental import pallas as pl
from jax.experimental.pallas import tpu as pltpu


def _mirror_kernel(signs_ref, theta_ref, out_ref):
    # signs_ref : (2, N) float32  -- row 0 = horizontal sign, row 1 = vertical sign
    # theta_ref : (6, N)          -- params on sublanes, (stacked) batch on lanes
    R, N = theta_ref.shape
    h = signs_ref[0:1, :]                                   # (1, N)
    v = signs_ref[1:2, :]                                   # (1, N)
    row = jax.lax.broadcasted_iota(jnp.int32, (R, N), 0)    # param index 0..5
    mirror = jnp.where(row < 3, h, v)                       # rows 0-2: h, rows 3-5: v
    out_ref[...] = theta_ref[...] * mirror.astype(out_ref.dtype)


def random_mirror(theta1, theta2, key, *, p: float = 0.5, vertical: bool = True):
    """Applies RandomMirror to (theta1, theta2). Returns new arrays (no in-place)."""
    assert theta1.shape == theta2.shape and theta1.shape[1] == 6
    B, C = theta1.shape

    kh, kv = jax.random.split(key)
    h_sign = jnp.where(jax.random.bernoulli(kh, p, (B,)), 1.0, -1.0).astype(jnp.float32)
    if vertical:
        v_sign = jnp.where(jax.random.bernoulli(kv, p, (B,)), 1.0, -1.0).astype(jnp.float32)
    else:
        v_sign = jnp.ones((B,), jnp.float32)

    # Same mirror applied to theta1 and theta2 -> stack them along batch and
    # tile the signs.  Transpose so the (large) batch axis is the lane axis.
    signs = jnp.stack(
        [jnp.concatenate([h_sign, h_sign]), jnp.concatenate([v_sign, v_sign])], axis=0
    )                                                             # (2, 2B)
    theta_packed = jnp.concatenate([theta1, theta2], axis=0).T    # (6, 2B) lane-dense

    out_packed = pl.pallas_call(
        _mirror_kernel,
        out_shape=jax.ShapeDtypeStruct((C, 2 * B), theta1.dtype),
        in_specs=[
            pl.BlockSpec(memory_space=pltpu.MemorySpace.VMEM),   # signs
            pl.BlockSpec(memory_space=pltpu.MemorySpace.VMEM),   # packed theta
        ],
        out_specs=pl.BlockSpec(memory_space=pltpu.MemorySpace.VMEM),
        input_output_aliases={1: 0},   # packed theta buffer is reused for the output
    )(signs, theta_packed)

    out = out_packed.T                                            # (2B, 6)
    return out[:B], out[B:]


if __name__ == "__main__":
    key = jax.random.PRNGKey(0)
    k1, k2, kmirror = jax.random.split(key, 3)
    B = 4
    theta1 = jax.random.normal(k1, (B, 6), dtype=jnp.float32)
    theta2 = jax.random.normal(k2, (B, 6), dtype=jnp.float32)

    out1, out2 = random_mirror(theta1, theta2, kmirror, p=0.5, vertical=True)
    out1, out2 = jax.block_until_ready((out1, out2))

    # Sanity check: outputs must equal +/- inputs, with a uniform sign per row
    # within cols 0-2 (horizontal) and within cols 3-5 (vertical), and the same
    # mirror applied to both thetas.
    import numpy as np
    o1, t1 = np.asarray(out1), np.asarray(theta1)
    o2, t2 = np.asarray(out2), np.asarray(theta2)
    ratio1 = o1 / t1
    ratio2 = o2 / t2
    assert np.allclose(np.abs(ratio1), 1.0, atol=1e-5)
    assert np.allclose(ratio1, ratio2, atol=1e-5)
    for b in range(B):
        assert np.allclose(ratio1[b, 0:3], ratio1[b, 0], atol=1e-5)  # uniform h-sign
        assert np.allclose(ratio1[b, 3:6], ratio1[b, 3], atol=1e-5)  # uniform v-sign

    print("KERNEL_OK")
</pallas_src>

<mosaic_0001>
module attributes {stable_mosaic.version = 11 : i64} {
  func.func @_mirror_kernel(%arg0: memref<2x8xf32, #tpu.memory_space<vmem>>, %arg1: memref<6x8xf32, #tpu.memory_space<vmem>>, %arg2: memref<6x8xf32, #tpu.memory_space<vmem>>) attributes {dimension_semantics = [], scalar_prefetch = 0 : i64, scratch_operands = 0 : i64, tpu.core_type = #tpu.core_type<tc>} {
    %c0 = arith.constant 0 : index
    %c0_0 = arith.constant 0 : index
    %0 = vector.load %arg0[%c0, %c0_0] : memref<2x8xf32, #tpu.memory_space<vmem>>, vector<1x8xf32>
    %c1 = arith.constant 1 : index
    %c0_1 = arith.constant 0 : index
    %1 = vector.load %arg0[%c1, %c0_1] : memref<2x8xf32, #tpu.memory_space<vmem>>, vector<1x8xf32>
    %2 = tpu.iota {dimensions = array<i32: 0>} : vector<6x8xi32>
    %c3_i32 = arith.constant 3 : i32
    %3 = vector.broadcast %c3_i32 : i32 to vector<6x8xi32>
    %4 = arith.cmpi slt, %2, %3 : vector<6x8xi32>
    %5 = vector.shape_cast %0 : vector<1x8xf32> to vector<1x8xf32>
    %6 = vector.broadcast %5 : vector<1x8xf32> to vector<6x8xf32>
    %7 = vector.shape_cast %1 : vector<1x8xf32> to vector<1x8xf32>
    %8 = vector.broadcast %7 : vector<1x8xf32> to vector<6x8xf32>
    %9 = arith.select %4, %6, %8 : vector<6x8xi1>, vector<6x8xf32>
    %c0_2 = arith.constant 0 : index
    %c0_3 = arith.constant 0 : index
    %10 = vector.load %arg1[%c0_2, %c0_3] : memref<6x8xf32, #tpu.memory_space<vmem>>, vector<6x8xf32>
    %11 = arith.mulf %10, %9 : vector<6x8xf32>
    %c0_4 = arith.constant 0 : index
    %c0_5 = arith.constant 0 : index
    %12 = vector.load %arg2[%c0_4, %c0_5] : memref<6x8xf32, #tpu.memory_space<vmem>>, vector<6x8xf32>
    tpu.vector_store %arg2[%c0_4, %c0_5], %11 {strides = array<i32>} : memref<6x8xf32, #tpu.memory_space<vmem>>, vector<6x8xf32>,
    return
  }
}

</mosaic_0001>

<llo_original>
// kernel: tpu_custom_call.1
$region0: #{tpu_custom_call.1}
  #allocation0 [shape = 'u32[]', space=smem, size = 0x4, offset = 0x4, fixed_abs, tag = 'smem constant byte address 0x4 - core index']
  #allocation1 [shape = 'u32[144,128]{1,0:T(1,128)}', space=vmem, size = 0x12000, scoped, tag = 'internal scratch']
  %s0 = inlined_call_operand.vmem [shape: f32[2,8], index: 0, kind: input, shape index: {}]
  %s1 = inlined_call_operand.hbm [shape: f32[6,8], index: 1, kind: input, shape index: {}, may-alias: {1,2}]
  %s2 = inlined_call_operand.hbm [shape: f32[6,8], index: 2, kind: output, shape index: {}, may-alias: {1,2}]
  %s3 = sld [smem:[#allocation0]]
  $region22: #{tpu_custom_call.1} parent=0
    _
  %s5 = ssub.s32 1, %s3
  %s6 = scalar_select 0, %s5, %s3
  $region1: #{tpu_custom_call.1} parent=0
    #allocation2 [shape = 'u8[4096]{0}', space=vmem, size = 0x1000, scoped, tag = 'input window, operand 1, single buffered']
    #allocation3 [shape = 's32[1]{0}', space=sflag, size = 0x4, scoped, tag = 'scoped memory for tpu_custom_call.1']
    #allocation4 [shape = 's32[1]{0}', space=sflag, size = 0x4, scoped, tag = 'scoped memory for tpu_custom_call.1']
    #allocation5 [shape = 'u8[4096]{0}', space=vmem, size = 0x1000, scoped, tag = 'output window, operand 0, single buffered']
    %7 = vsyncpa [#allocation3], 0
    %8 = vsyncpa [#allocation4], 0
    // Predicated region
    $region2: #{tpu_custom_call.1} parent=1 // pred_check
      _
    $region3: #{tpu_custom_call.1} parent=1 // pred_check_branch
      %10 = sbr.rel (0) target = $region5
    $region4: #{tpu_custom_call.1} parent=1 // pred_region
      _
    $region5: #{tpu_custom_call.1} parent=1 // pred_fallthru
      _
    // Predicated region
    $region6: #{tpu_custom_call.1} parent=1 // pred_check
      _
    $region7: #{tpu_custom_call.1} parent=1 // pred_check_branch
      %12 = sbr.rel (0) target = $region9
    $region8: #{tpu_custom_call.1} parent=1 // pred_region
      %s14 = ssub.s32 128, 128
      %15 = vsyncadd [#allocation3], %s14
      %s17 = sshll.u32 [#allocation2], 4
      %s18 = int_to_ptr.vmem [resolvable:$true] %s17
      %20 = dma.hbm_to_vmem [thread:$0]  %s1, 128, %s18, [#allocation3]
    $region9: #{tpu_custom_call.1} parent=1 // pred_fallthru
      _
    // Predicated region
    $region10: #{tpu_custom_call.1} parent=1 // pred_check
      _
    $region11: #{tpu_custom_call.1} parent=1 // pred_check_branch
      %22 = sbr.rel (0) target = $region13
    $region12: #{tpu_custom_call.1} parent=1 // pred_region
      %23 = dma.done [#allocation3], 128
    $region13: #{tpu_custom_call.1} parent=1 // pred_fallthru
      _
    %v24 = vld [vmem:[%s0] sm:$0x1]
    %v25 = vld [vmem:[%s0 + $0x1] sm:$0x1]
    %v26 = vlaneseq
    %v27 = vshrl.u32 %v26, 7
    %vm28 = vcmp.lt.s32.totalorder %v27, 3
    %v29 = vlaneseq
    %v30 = vshrl.u32 %v29, 7
    %v31 = vsub.s32 0, %v30
    %v32 = vrot.slane %v24, %v31
    %v33 = vlaneseq
    %v34 = vshrl.u32 %v33, 7
    %v35 = vsub.s32 0, %v34
    %v36 = vrot.slane %v25, %v35
    %v37 = vsel %vm28, %v32, %v36
    %v38 = vld [vmem:[#allocation2] sm:$0x3f]
    %v39 = vmul.f32 %v38, %v37
    %vm40 = vcmask 62464
    %41 = vst.msk [vmem:[#allocation5] sm:$0x3f] %vm40, %v39
    // Predicated region
    $region14: #{tpu_custom_call.1} parent=1 // pred_check
      _
    $region15: #{tpu_custom_call.1} parent=1 // pred_check_branch
      %43 = sbr.rel (0) target = $region17
    $region16: #{tpu_custom_call.1} parent=1 // pred_region
      %s45 = ssub.s32 128, 128
      %46 = vsyncadd [#allocation4], %s45
      %s48 = sshll.u32 [#allocation5], 4
      %s49 = int_to_ptr.vmem [resolvable:$true] %s48
      %51 = dma.vmem_to_hbm [thread:$0]  %s49, 128, %s2, [#allocation4]
    $region17: #{tpu_custom_call.1} parent=1 // pred_fallthru
      _
    // Predicated region
    $region18: #{tpu_custom_call.1} parent=1 // pred_check
      _
    $region19: #{tpu_custom_call.1} parent=1 // pred_check_branch
      %53 = sbr.rel (0) target = $region21
    $region20: #{tpu_custom_call.1} parent=1 // pred_region
      %54 = dma.done [#allocation4], 128
    $region21: #{tpu_custom_call.1} parent=1 // pred_fallthru
      _
    %55 = vsyncpa [#allocation3], 1
    %56 = vsyncpa [#allocation4], 1

</llo_original>
